<compile_context>
chip_gen: v5e
topology: v5e:2x2
jax: 0.10.0
libtpu: 0.0.40
codegen_flags: <defaults>
</compile_context>

<pallas_src>
import numpy as np
import jax
import jax.numpy as jnp
from jax import lax
from jax.experimental import pallas as pl
from jax.experimental.pallas import tpu as pltpu


def _round_up(a, k):
    return (a + k - 1) // k * k


def logsig_layer(x, m=2, *, stream_dtype=jnp.float32, max_time_chunk=256):
    """Pallas equivalent of LogSigLayer(m).forward(x) for m == 2.

    x: (B, L, D). Returns (B, D + D*(D-1)//2) float32.
    stream_dtype: dtype used to stream the path HBM->VMEM (bf16 halves DMA
      traffic; in-kernel accumulation is always f32).
    """
    assert m == 2, "only truncation level m=2 is implemented (closed form)"
    B, L, d = x.shape
    assert L >= 2, "path length must be >= 2 for a non-degenerate signature"
    assert d >= 1
    npairs = d * (d - 1) // 2
    outdim = d + npairs

    itm = jnp.dtype(stream_dtype).itemsize
    assert itm <= 4
    sub = max(8, 32 // itm)               # sublane packing multiple (f32:8, bf16:16)

    # ---- time-chunk size (inner "arbitrary" grid axis) -------------------
    if L <= max_time_chunk:
        cl, nchunks = L, 1
    else:
        cl = max(sub, max_time_chunk // sub * sub)
        nchunks = pl.cdiv(L, cl)

    # ---- batch tile (lane axis) sized against a VMEM budget --------------
    clp = _round_up(cl, 8)
    per_lane = (2 * d * clp * itm                       # double-buffered input block
                + 4 * (3 * d * clp + 4 * clp)           # f32 P/D/low/hi temporaries
                + 4 * (2 * _round_up(outdim, 8)         # double-buffered out block
                       + _round_up(max(npairs, 1), 8) + 2 * _round_up(d, 8)))
    budget = 24 * 1024 * 1024
    if B <= 128:
        tb = B                                          # single full-dim lane block
    else:
        tb = max(128, min(4096, budget // per_lane // 128 * 128))
        tb = min(tb, B // 128 * 128)
        if B >= 256 and pl.cdiv(B, tb) < 2:             # v7x: feed both TensorCores
            tb = max(128, (B // 2) // 128 * 128)
    nb = pl.cdiv(B, tb)
    vmem_limit = min(48 * 1024 * 1024,
                     max(32 * 1024 * 1024, tb * per_lane + 2 * 1024 * 1024))

    f32 = jnp.float32
    last_local = (L - 1) - (nchunks - 1) * cl           # static index of x[L-1]
    need_mask = (nchunks * cl != L)                     # ragged last time-chunk?

    def kernel(x_ref, out_ref, x0_sc, prev_sc, acc_sc):
        # x_ref: (d, cl, tb) time-chunk, batch tile on the lane axis.
        c = pl.program_id(1)

        # ---- init at the first time-chunk of this batch tile ----
        @pl.when(c == 0)
        def _():
            if npairs:
                acc_sc[...] = jnp.zeros_like(acc_sc)
            for ci in range(d):
                x0_sc[ci:ci + 1, :] = x_ref[ci, 0:1, :].astype(f32)

        # ---- Levy-area contribution of the diff straddling the chunk boundary
        if nchunks > 1 and npairs:
            @pl.when(c > 0)
            def _():
                Pb = [prev_sc[ci:ci + 1, :] - x0_sc[ci:ci + 1, :] for ci in range(d)]
                Db = [x_ref[ci, 0:1, :].astype(f32) - prev_sc[ci:ci + 1, :]
                      for ci in range(d)]
                rows = []
                for i in range(d):
                    for j in range(i + 1, d):
                        rows.append(Pb[i] * Db[j] - Pb[j] * Db[i])
                acc_sc[...] += jnp.concatenate(rows, axis=0)

        # ---- within-chunk Levy-area contributions ----
        if npairs:
            if need_mask:
                valid_m1 = jnp.minimum(cl - 1, (L - 1) - c * cl)
                mask = lax.broadcasted_iota(jnp.int32, (cl - 1, tb), 0) < valid_m1
            P, D = [], []
            for ci in range(d):
                if itm == 4:
                    # slice the Ref (no materialized full-channel temporary)
                    low = x_ref[ci, 0:cl - 1, :]
                    hi = x_ref[ci, 1:cl, :]
                else:
                    # sub-32-bit: one load + upcast per channel, then value-slice
                    chv = x_ref[ci].astype(f32)
                    low = chv[0:cl - 1, :]
                    hi = chv[1:cl, :]
                p = low.astype(f32) - x0_sc[ci:ci + 1, :]
                dd = hi.astype(f32) - low.astype(f32)
                if need_mask:
                    p = jnp.where(mask, p, 0.0)
                    dd = jnp.where(mask, dd, 0.0)
                P.append(p)
                D.append(dd)
            rows = []
            for i in range(d):
                for j in range(i + 1, d):
                    rows.append(jnp.sum(P[i] * D[j] - P[j] * D[i],
                                        axis=0, keepdims=True))
            acc_sc[...] += jnp.concatenate(rows, axis=0)

        # ---- carry last sample of this chunk for the next boundary diff ----
        if nchunks > 1:
            for ci in range(d):
                prev_sc[ci:ci + 1, :] = x_ref[ci, cl - 1:cl, :].astype(f32)

        # ---- finalize: level-1 increments + 0.5 * areas, one lane-dense store
        @pl.when(c == nchunks - 1)
        def _():
            inc = [x_ref[ci, last_local:last_local + 1, :].astype(f32)
                   - x0_sc[ci:ci + 1, :] for ci in range(d)]
            if npairs:
                out = jnp.concatenate(inc + [0.5 * acc_sc[...]], axis=0)
            else:
                out = jnp.concatenate(inc, axis=0)
            out_ref[...] = out.astype(out_ref.dtype)

    # Single relayout copy: channels-major with the batch on the 128-lane axis.
    # No pad. allow_input_fusion lets XLA fuse this transpose into the call.
    xt = jnp.transpose(x.astype(stream_dtype), (2, 1, 0))        # (d, L, B)

    out_t = pl.pallas_call(
        kernel,
        out_shape=jax.ShapeDtypeStruct((outdim, B), jnp.float32),
        grid=(nb, nchunks),
        in_specs=[pl.BlockSpec((d, cl, tb), lambda b, c: (0, c, b))],
        out_specs=pl.BlockSpec((outdim, tb), lambda b, c: (0, b)),
        scratch_shapes=[pltpu.VMEM((d, tb), jnp.float32),                # x[0]
                        pltpu.VMEM((d, tb), jnp.float32),                # prev chunk end
                        pltpu.VMEM((max(npairs, 1), tb), jnp.float32)],  # area accum
        compiler_params=pltpu.CompilerParams(
            dimension_semantics=("parallel", "arbitrary"),
            vmem_limit_bytes=vmem_limit,
            allow_input_fusion=[True]),
    )(xt)

    return out_t.T                                                # (B, outdim)


def _logsig2_reference(x):
    """Pure-JAX reference for the m=2 log-signature (same math, no Pallas)."""
    x = x.astype(jnp.float32)
    d = x.shape[-1]
    inc = x[:, -1, :] - x[:, 0, :]
    P = x[:, :-1, :] - x[:, :1, :]
    Dl = x[:, 1:, :] - x[:, :-1, :]
    M = jnp.einsum('bli,blj->bij', P, Dl)
    A = 0.5 * (M - jnp.swapaxes(M, 1, 2))
    iu, ju = np.triu_indices(d, k=1)
    if len(iu):
        return jnp.concatenate([inc, A[:, iu, ju]], axis=-1)
    return inc


if __name__ == "__main__":
    key = jax.random.PRNGKey(0)
    k1, k2, k3 = jax.random.split(key, 3)

    # 1) small demo shape: batch of 2 paths, length 16, dim 4 (f32 streaming).
    B, L, D = 2, 16, 4
    x = jax.random.normal(k1, (B, L, D), dtype=jnp.float32)
    out = jax.block_until_ready(logsig_layer(x, m=2))
    ref = jax.block_until_ready(_logsig2_reference(x))
    assert out.shape == (B, D + D * (D - 1) // 2), out.shape
    np.testing.assert_allclose(np.asarray(out), np.asarray(ref),
                               rtol=1e-5, atol=1e-5)

    # 2) exercise time-chunking (ragged last chunk + boundary carries) and
    #    partial batch lane-tiles: B=200 (128 + partial 72), L=20, chunk=8.
    x2 = jax.random.normal(k2, (200, 20, 3), dtype=jnp.float32)
    out2 = jax.block_until_ready(logsig_layer(x2, m=2, max_time_chunk=8))
    ref2 = jax.block_until_ready(_logsig2_reference(x2))
    np.testing.assert_allclose(np.asarray(out2), np.asarray(ref2),
                               rtol=1e-4, atol=1e-4)

    # 3) bf16-streaming path (compare against the reference computed on the
    #    same bf16-quantized input; in-kernel math is f32 on both sides).
    x3 = jax.random.normal(k3, (64, 16, 4), dtype=jnp.float32)
    out3 = jax.block_until_ready(logsig_layer(x3, m=2, stream_dtype=jnp.bfloat16))
    ref3 = jax.block_until_ready(
        _logsig2_reference(x3.astype(jnp.bfloat16).astype(jnp.float32)))
    np.testing.assert_allclose(np.asarray(out3), np.asarray(ref3),
                               rtol=1e-4, atol=1e-4)

    print("KERNEL_OK")
</pallas_src>

<mosaic_0001>
module attributes {stable_mosaic.version = 11 : i64} {
  func.func @kernel(%arg0: i32, %arg1: i32, %arg2: memref<4x16x2xf32, #tpu.memory_space<vmem>>, %arg3: memref<10x2xf32, #tpu.memory_space<vmem>>, %arg4: memref<4x2xf32, #tpu.memory_space<vmem>>, %arg5: memref<4x2xf32, #tpu.memory_space<vmem>>, %arg6: memref<6x2xf32, #tpu.memory_space<vmem>>) attributes {dimension_semantics = [#tpu.dimension_semantics<parallel>, #tpu.dimension_semantics<arbitrary>], iteration_bounds = array<i64: 1, 1>, scalar_prefetch = 0 : i64, scratch_operands = 3 : i64, tpu.core_type = #tpu.core_type<tc>, window_params = [{transform_indices = @transform_0, window_bounds = array<i64: 4, 16, 2>}, {transform_indices = @transform_1, window_bounds = array<i64: 10, 2>}]} {
    %c0_i32 = arith.constant 0 : i32
    %0 = arith.cmpi eq, %arg1, %c0_i32 : i32
    %1 = arith.extui %0 : i1 to i32
    %c0_i32_0 = arith.constant 0 : i32
    %2 = arith.cmpi ne, %1, %c0_i32_0 : i32
    scf.if %2 {
      %cst_40 = arith.constant 0.000000e+00 : f32
      %72 = vector.broadcast %cst_40 : f32 to vector<6x2xf32>
      %c0_41 = arith.constant 0 : index
      %c0_42 = arith.constant 0 : index
      %73 = vector.load %arg6[%c0_41, %c0_42] : memref<6x2xf32, #tpu.memory_space<vmem>>, vector<6x2xf32>
      tpu.vector_store %arg6[%c0_41, %c0_42], %72 {strides = array<i32>} : memref<6x2xf32, #tpu.memory_space<vmem>>, vector<6x2xf32>,
      %c0_43 = arith.constant 0 : index
      %c0_44 = arith.constant 0 : index
      %c0_45 = arith.constant 0 : index
      %74 = vector.load %arg2[%c0_43, %c0_44, %c0_45] : memref<4x16x2xf32, #tpu.memory_space<vmem>>, vector<1x1x2xf32>
      %75 = vector.shape_cast %74 : vector<1x1x2xf32> to vector<1x2xf32>
      %c0_46 = arith.constant 0 : index
      %c0_47 = arith.constant 0 : index
      %76 = vector.load %arg4[%c0_46, %c0_47] : memref<4x2xf32, #tpu.memory_space<vmem>>, vector<1x2xf32>
      tpu.vector_store %arg4[%c0_46, %c0_47], %75 {strides = array<i32>} : memref<4x2xf32, #tpu.memory_space<vmem>>, vector<1x2xf32>,
      %c1_48 = arith.constant 1 : index
      %c0_49 = arith.constant 0 : index
      %c0_50 = arith.constant 0 : index
      %77 = vector.load %arg2[%c1_48, %c0_49, %c0_50] : memref<4x16x2xf32, #tpu.memory_space<vmem>>, vector<1x1x2xf32>
      %78 = vector.shape_cast %77 : vector<1x1x2xf32> to vector<1x2xf32>
      %c1_51 = arith.constant 1 : index
      %c0_52 = arith.constant 0 : index
      %79 = vector.load %arg4[%c1_51, %c0_52] : memref<4x2xf32, #tpu.memory_space<vmem>>, vector<1x2xf32>
      tpu.vector_store %arg4[%c1_51, %c0_52], %78 {strides = array<i32>} : memref<4x2xf32, #tpu.memory_space<vmem>>, vector<1x2xf32>,
      %c2_53 = arith.constant 2 : index
      %c0_54 = arith.constant 0 : index
      %c0_55 = arith.constant 0 : index
      %80 = vector.load %arg2[%c2_53, %c0_54, %c0_55] : memref<4x16x2xf32, #tpu.memory_space<vmem>>, vector<1x1x2xf32>
      %81 = vector.shape_cast %80 : vector<1x1x2xf32> to vector<1x2xf32>
      %c2_56 = arith.constant 2 : index
      %c0_57 = arith.constant 0 : index
      %82 = vector.load %arg4[%c2_56, %c0_57] : memref<4x2xf32, #tpu.memory_space<vmem>>, vector<1x2xf32>
      tpu.vector_store %arg4[%c2_56, %c0_57], %81 {strides = array<i32>} : memref<4x2xf32, #tpu.memory_space<vmem>>, vector<1x2xf32>,
      %c3_58 = arith.constant 3 : index
      %c0_59 = arith.constant 0 : index
      %c0_60 = arith.constant 0 : index
      %83 = vector.load %arg2[%c3_58, %c0_59, %c0_60] : memref<4x16x2xf32, #tpu.memory_space<vmem>>, vector<1x1x2xf32>
      %84 = vector.shape_cast %83 : vector<1x1x2xf32> to vector<1x2xf32>
      %c3_61 = arith.constant 3 : index
      %c0_62 = arith.constant 0 : index
      %85 = vector.load %arg4[%c3_61, %c0_62] : memref<4x2xf32, #tpu.memory_space<vmem>>, vector<1x2xf32>
      tpu.vector_store %arg4[%c3_61, %c0_62], %84 {strides = array<i32>} : memref<4x2xf32, #tpu.memory_space<vmem>>, vector<1x2xf32>,
    } else {
    }
    %c0 = arith.constant 0 : index
    %c0_1 = arith.constant 0 : index
    %c0_2 = arith.constant 0 : index
    %3 = vector.load %arg2[%c0, %c0_1, %c0_2] : memref<4x16x2xf32, #tpu.memory_space<vmem>>, vector<1x15x2xf32>
    %4 = vector.shape_cast %3 : vector<1x15x2xf32> to vector<15x2xf32>
    %c0_3 = arith.constant 0 : index
    %c1 = arith.constant 1 : index
    %c0_4 = arith.constant 0 : index
    %5 = vector.load %arg2[%c0_3, %c1, %c0_4] : memref<4x16x2xf32, #tpu.memory_space<vmem>>, vector<1x15x2xf32>
    %6 = vector.shape_cast %5 : vector<1x15x2xf32> to vector<15x2xf32>
    %c0_5 = arith.constant 0 : index
    %c0_6 = arith.constant 0 : index
    %7 = vector.load %arg4[%c0_5, %c0_6] : memref<4x2xf32, #tpu.memory_space<vmem>>, vector<1x2xf32>
    %8 = vector.broadcast %7 : vector<1x2xf32> to vector<15x2xf32>
    %9 = arith.subf %4, %8 : vector<15x2xf32>
    %10 = arith.subf %6, %4 : vector<15x2xf32>
    %c1_7 = arith.constant 1 : index
    %c0_8 = arith.constant 0 : index
    %c0_9 = arith.constant 0 : index
    %11 = vector.load %arg2[%c1_7, %c0_8, %c0_9] : memref<4x16x2xf32, #tpu.memory_space<vmem>>, vector<1x15x2xf32>
    %12 = vector.shape_cast %11 : vector<1x15x2xf32> to vector<15x2xf32>
    %c1_10 = arith.constant 1 : index
    %c1_11 = arith.constant 1 : index
    %c0_12 = arith.constant 0 : index
    %13 = vector.load %arg2[%c1_10, %c1_11, %c0_12] : memref<4x16x2xf32, #tpu.memory_space<vmem>>, vector<1x15x2xf32>
    %14 = vector.shape_cast %13 : vector<1x15x2xf32> to vector<15x2xf32>
    %c1_13 = arith.constant 1 : index
    %c0_14 = arith.constant 0 : index
    %15 = vector.load %arg4[%c1_13, %c0_14] : memref<4x2xf32, #tpu.memory_space<vmem>>, vector<1x2xf32>
    %16 = vector.broadcast %15 : vector<1x2xf32> to vector<15x2xf32>
    %17 = arith.subf %12, %16 : vector<15x2xf32>
    %18 = arith.subf %14, %12 : vector<15x2xf32>
    %c2 = arith.constant 2 : index
    %c0_15 = arith.constant 0 : index
    %c0_16 = arith.constant 0 : index
    %19 = vector.load %arg2[%c2, %c0_15, %c0_16] : memref<4x16x2xf32, #tpu.memory_space<vmem>>, vector<1x15x2xf32>
    %20 = vector.shape_cast %19 : vector<1x15x2xf32> to vector<15x2xf32>
    %c2_17 = arith.constant 2 : index
    %c1_18 = arith.constant 1 : index
    %c0_19 = arith.constant 0 : index
    %21 = vector.load %arg2[%c2_17, %c1_18, %c0_19] : memref<4x16x2xf32, #tpu.memory_space<vmem>>, vector<1x15x2xf32>
    %22 = vector.shape_cast %21 : vector<1x15x2xf32> to vector<15x2xf32>
    %c2_20 = arith.constant 2 : index
    %c0_21 = arith.constant 0 : index
    %23 = vector.load %arg4[%c2_20, %c0_21] : memref<4x2xf32, #tpu.memory_space<vmem>>, vector<1x2xf32>
    %24 = vector.broadcast %23 : vector<1x2xf32> to vector<15x2xf32>
    %25 = arith.subf %20, %24 : vector<15x2xf32>
    %26 = arith.subf %22, %20 : vector<15x2xf32>
    %c3 = arith.constant 3 : index
    %c0_22 = arith.constant 0 : index
    %c0_23 = arith.constant 0 : index
    %27 = vector.load %arg2[%c3, %c0_22, %c0_23] : memref<4x16x2xf32, #tpu.memory_space<vmem>>, vector<1x15x2xf32>
    %28 = vector.shape_cast %27 : vector<1x15x2xf32> to vector<15x2xf32>
    %c3_24 = arith.constant 3 : index
    %c1_25 = arith.constant 1 : index
    %c0_26 = arith.constant 0 : index
    %29 = vector.load %arg2[%c3_24, %c1_25, %c0_26] : memref<4x16x2xf32, #tpu.memory_space<vmem>>, vector<1x15x2xf32>
    %30 = vector.shape_cast %29 : vector<1x15x2xf32> to vector<15x2xf32>
    %c3_27 = arith.constant 3 : index
    %c0_28 = arith.constant 0 : index
    %31 = vector.load %arg4[%c3_27, %c0_28] : memref<4x2xf32, #tpu.memory_space<vmem>>, vector<1x2xf32>
    %32 = vector.broadcast %31 : vector<1x2xf32> to vector<15x2xf32>
    %33 = arith.subf %28, %32 : vector<15x2xf32>
    %34 = arith.subf %30, %28 : vector<15x2xf32>
    %35 = arith.mulf %9, %18 : vector<15x2xf32>
    %36 = arith.mulf %17, %10 : vector<15x2xf32>
    %37 = arith.subf %35, %36 : vector<15x2xf32>
    %cst = arith.constant dense<0.000000e+00> : vector<2xf32>
    %38 = vector.multi_reduction <add>, %37, %cst [0] : vector<15x2xf32> to vector<2xf32>
    %39 = vector.shape_cast %38 : vector<2xf32> to vector<1x2xf32>
    %40 = arith.mulf %9, %26 : vector<15x2xf32>
    %41 = arith.mulf %25, %10 : vector<15x2xf32>
    %42 = arith.subf %40, %41 : vector<15x2xf32>
    %cst_29 = arith.constant dense<0.000000e+00> : vector<2xf32>
    %43 = vector.multi_reduction <add>, %42, %cst_29 [0] : vector<15x2xf32> to vector<2xf32>
    %44 = vector.shape_cast %43 : vector<2xf32> to vector<1x2xf32>
    %45 = arith.mulf %9, %34 : vector<15x2xf32>
    %46 = arith.mulf %33, %10 : vector<15x2xf32>
    %47 = arith.subf %45, %46 : vector<15x2xf32>
    %cst_30 = arith.constant dense<0.000000e+00> : vector<2xf32>
    %48 = vector.multi_reduction <add>, %47, %cst_30 [0] : vector<15x2xf32> to vector<2xf32>
    %49 = vector.shape_cast %48 : vector<2xf32> to vector<1x2xf32>
    %50 = arith.mulf %17, %26 : vector<15x2xf32>
    %51 = arith.mulf %25, %18 : vector<15x2xf32>
    %52 = arith.subf %50, %51 : vector<15x2xf32>
    %cst_31 = arith.constant dense<0.000000e+00> : vector<2xf32>
    %53 = vector.multi_reduction <add>, %52, %cst_31 [0] : vector<15x2xf32> to vector<2xf32>
    %54 = vector.shape_cast %53 : vector<2xf32> to vector<1x2xf32>
    %55 = arith.mulf %17, %34 : vector<15x2xf32>
    %56 = arith.mulf %33, %18 : vector<15x2xf32>
    %57 = arith.subf %55, %56 : vector<15x2xf32>
    %cst_32 = arith.constant dense<0.000000e+00> : vector<2xf32>
    %58 = vector.multi_reduction <add>, %57, %cst_32 [0] : vector<15x2xf32> to vector<2xf32>
    %59 = vector.shape_cast %58 : vector<2xf32> to vector<1x2xf32>
    %60 = arith.mulf %25, %34 : vector<15x2xf32>
    %61 = arith.mulf %33, %26 : vector<15x2xf32>
    %62 = arith.subf %60, %61 : vector<15x2xf32>
    %cst_33 = arith.constant dense<0.000000e+00> : vector<2xf32>
    %63 = vector.multi_reduction <add>, %62, %cst_33 [0] : vector<15x2xf32> to vector<2xf32>
    %64 = vector.shape_cast %63 : vector<2xf32> to vector<1x2xf32>
    %c0_34 = arith.constant 0 : index
    %c0_35 = arith.constant 0 : index
    %65 = vector.load %arg6[%c0_34, %c0_35] : memref<6x2xf32, #tpu.memory_space<vmem>>, vector<6x2xf32>
    %66 = tpu.concatenate %39, %44, %49, %54, %59, %64 in 0 : vector<1x2xf32>, vector<1x2xf32>, vector<1x2xf32>, vector<1x2xf32>, vector<1x2xf32>, vector<1x2xf32> -> vector<6x2xf32>
    %67 = arith.addf %65, %66 : vector<6x2xf32>
    %c0_36 = arith.constant 0 : index
    %c0_37 = arith.constant 0 : index
    %68 = vector.load %arg6[%c0_36, %c0_37] : memref<6x2xf32, #tpu.memory_space<vmem>>, vector<6x2xf32>
    tpu.vector_store %arg6[%c0_36, %c0_37], %67 {strides = array<i32>} : memref<6x2xf32, #tpu.memory_space<vmem>>, vector<6x2xf32>,
    %c0_i32_38 = arith.constant 0 : i32
    %69 = arith.cmpi eq, %arg1, %c0_i32_38 : i32
    %70 = arith.extui %69 : i1 to i32
    %c0_i32_39 = arith.constant 0 : i32
    %71 = arith.cmpi ne, %70, %c0_i32_39 : i32
    scf.if %71 {
      %c0_40 = arith.constant 0 : index
      %c15 = arith.constant 15 : index
      %c0_41 = arith.constant 0 : index
      %72 = vector.load %arg2[%c0_40, %c15, %c0_41] : memref<4x16x2xf32, #tpu.memory_space<vmem>>, vector<1x1x2xf32>
      %73 = vector.shape_cast %72 : vector<1x1x2xf32> to vector<1x2xf32>
      %c0_42 = arith.constant 0 : index
      %c0_43 = arith.constant 0 : index
      %74 = vector.load %arg4[%c0_42, %c0_43] : memref<4x2xf32, #tpu.memory_space<vmem>>, vector<1x2xf32>
      %75 = arith.subf %73, %74 : vector<1x2xf32>
      %c1_44 = arith.constant 1 : index
      %c15_45 = arith.constant 15 : index
      %c0_46 = arith.constant 0 : index
      %76 = vector.load %arg2[%c1_44, %c15_45, %c0_46] : memref<4x16x2xf32, #tpu.memory_space<vmem>>, vector<1x1x2xf32>
      %77 = vector.shape_cast %76 : vector<1x1x2xf32> to vector<1x2xf32>
      %c1_47 = arith.constant 1 : index
      %c0_48 = arith.constant 0 : index
      %78 = vector.load %arg4[%c1_47, %c0_48] : memref<4x2xf32, #tpu.memory_space<vmem>>, vector<1x2xf32>
      %79 = arith.subf %77, %78 : vector<1x2xf32>
      %c2_49 = arith.constant 2 : index
      %c15_50 = arith.constant 15 : index
      %c0_51 = arith.constant 0 : index
      %80 = vector.load %arg2[%c2_49, %c15_50, %c0_51] : memref<4x16x2xf32, #tpu.memory_space<vmem>>, vector<1x1x2xf32>
      %81 = vector.shape_cast %80 : vector<1x1x2xf32> to vector<1x2xf32>
      %c2_52 = arith.constant 2 : index
      %c0_53 = arith.constant 0 : index
      %82 = vector.load %arg4[%c2_52, %c0_53] : memref<4x2xf32, #tpu.memory_space<vmem>>, vector<1x2xf32>
      %83 = arith.subf %81, %82 : vector<1x2xf32>
      %c3_54 = arith.constant 3 : index
      %c15_55 = arith.constant 15 : index
      %c0_56 = arith.constant 0 : index
      %84 = vector.load %arg2[%c3_54, %c15_55, %c0_56] : memref<4x16x2xf32, #tpu.memory_space<vmem>>, vector<1x1x2xf32>
      %85 = vector.shape_cast %84 : vector<1x1x2xf32> to vector<1x2xf32>
      %c3_57 = arith.constant 3 : index
      %c0_58 = arith.constant 0 : index
      %86 = vector.load %arg4[%c3_57, %c0_58] : memref<4x2xf32, #tpu.memory_space<vmem>>, vector<1x2xf32>
      %87 = arith.subf %85, %86 : vector<1x2xf32>
      %c0_59 = arith.constant 0 : index
      %c0_60 = arith.constant 0 : index
      %88 = vector.load %arg6[%c0_59, %c0_60] : memref<6x2xf32, #tpu.memory_space<vmem>>, vector<6x2xf32>
      %cst_61 = arith.constant 5.000000e-01 : f32
      %89 = vector.broadcast %cst_61 : f32 to vector<6x2xf32>
      %90 = arith.mulf %89, %88 : vector<6x2xf32>
      %91 = tpu.concatenate %75, %79, %83, %87, %90 in 0 : vector<1x2xf32>, vector<1x2xf32>, vector<1x2xf32>, vector<1x2xf32>, vector<6x2xf32> -> vector<10x2xf32>
      %c0_62 = arith.constant 0 : index
      %c0_63 = arith.constant 0 : index
      %92 = vector.load %arg3[%c0_62, %c0_63] : memref<10x2xf32, #tpu.memory_space<vmem>>, vector<10x2xf32>
      tpu.vector_store %arg3[%c0_62, %c0_63], %91 {strides = array<i32>} : memref<10x2xf32, #tpu.memory_space<vmem>>, vector<10x2xf32>,
    } else {
    }
    return
  }
  func.func @transform_0(%arg0: i32, %arg1: i32) -> (i32, i32, i32) {
    %c0_i32 = arith.constant 0 : i32
    %c0_i32_0 = arith.constant 0 : i32
    return %c0_i32, %arg1, %arg0 : i32, i32, i32
  }
  func.func @transform_1(%arg0: i32, %arg1: i32) -> (i32, i32) {
    %c0_i32 = arith.constant 0 : i32
    %c0_i32_0 = arith.constant 0 : i32
    return %c0_i32, %arg0 : i32, i32
  }
}

</mosaic_0001>

<llo_original>
// kernel: tpu_custom_call.1
$region0: #{tpu_custom_call.1}
  #allocation0 [shape = 'u32[]', space=smem, size = 0x4, offset = 0x4, fixed_abs, tag = 'smem constant byte address 0x4 - core index']
  #allocation1 [shape = 'u32[72,128]{1,0:T(1,128)}', space=vmem, size = 0x9000, scoped, tag = 'internal scratch']
  #allocation2 [shape = 'f32[4,2]{1,0:T(4,128)}', space=vmem, size = 0x800, scoped, tag = 'scratch operand']
  #allocation3 [shape = 'f32[4,2]{1,0:T(4,128)}', space=vmem, size = 0x800, scoped, tag = 'scratch operand']
  #allocation4 [shape = 'f32[6,2]{1,0:T(8,128)}', space=vmem, size = 0x1000, scoped, tag = 'scratch operand']
  %s0 = inlined_call_operand.vmem [shape: f32[4,16,2], index: 0, kind: input, shape index: {}]
  %s1 = inlined_call_operand.vmem [shape: f32[10,2], index: 1, kind: output, shape index: {}]
  %s2 = sld [smem:[#allocation0]]
  $region22: #{tpu_custom_call.1} parent=0
    _
  %s4 = ssub.s32 1, %s2
  %s5 = scalar_select 0, %s4, %s2
  // Predicated region
  $region2: #{tpu_custom_call.1} parent=0 // pred_check
    _
  $region3: #{tpu_custom_call.1} parent=0 // pred_check_branch
    %7 = sbr.rel (0) target = $region5
  $region4: #{tpu_custom_call.1} parent=0 // pred_region
    _
  $region5: #{tpu_custom_call.1} parent=0 // pred_fallthru
    _
  %p8 = scmp.eq.s32.totalorder 0, 0
  // Predicated region
  $region6: #{tpu_custom_call.1} parent=0 // pred_check
    %p9 = pneg %p8
  $region7: #{tpu_custom_call.1} parent=0 // pred_check_branch
    %11 = sbr.rel (%p9) target = $region9
  $region8: #{tpu_custom_call.1} parent=0 // pred_region
    %vm12 = vcmask 13312
    %13 = vst.msk [vmem:[#allocation4] sm:$0x3f] %vm12, 0.0
    %v14 = vld [vmem:[%s0] sm:$0x1]
    %vm15 = vcmask 8192
    %16 = vst.msk [vmem:[#allocation2] sm:$0x1] %vm15, %v14
    %s17 = scalar_lea.vmem %s0, 16
    %v18 = vld [vmem:[%s17] sm:$0x1]
    %19 = vst.msk [vmem:[#allocation2 + $0x1] sm:$0x1] %vm15, %v18
    %s20 = scalar_lea.vmem %s0, 32
    %v21 = vld [vmem:[%s20] sm:$0x1]
    %22 = vst.msk [vmem:[#allocation2 + $0x2] sm:$0x1] %vm15, %v21
    %s23 = scalar_lea.vmem %s0, 48
    %v24 = vld [vmem:[%s23] sm:$0x1]
    %25 = vst.msk [vmem:[#allocation2 + $0x3] sm:$0x1] %vm15, %v24
  $region9: #{tpu_custom_call.1} parent=0 // pred_fallthru
    _
  %v26 = vld [vmem:[%s0] sm:$0xff]
  %v27 = vld [vmem:[%s0 + $0x8] sm:$0x7f]
  %v28 = vld [vmem:[%s0 + $0x1] sm:$0xff]
  %v29 = vld [vmem:[%s0 + $0x9] sm:$0x7f]
  %v30 = vld [vmem:[#allocation2] sm:$0x1]
  %v31 = vperm.slane %v30, 0
  %v32 = vsub.f32 %v26, %v31
  %v33 = vsub.f32 %v27, %v31
  %v34 = vsub.f32 %v28, %v26
  %v35 = vsub.f32 %v29, %v27
  %s36 = scalar_lea.vmem %s0, 16
  %v37 = vld [vmem:[%s36] sm:$0xff]
  %v38 = vld [vmem:[%s36 + $0x8] sm:$0x7f]
  %v39 = vld [vmem:[%s36 + $0x1] sm:$0xff]
  %v40 = vld [vmem:[%s36 + $0x9] sm:$0x7f]
  %v41 = vld [vmem:[#allocation2 + $0x1] sm:$0x1]
  %v42 = vperm.slane %v41, 0
  %v43 = vsub.f32 %v37, %v42
  %v44 = vsub.f32 %v38, %v42
  %v45 = vsub.f32 %v39, %v37
  %v46 = vsub.f32 %v40, %v38
  %s47 = scalar_lea.vmem %s0, 32
  %v48 = vld [vmem:[%s47] sm:$0xff]
  %v49 = vld [vmem:[%s47 + $0x8] sm:$0x7f]
  %v50 = vld [vmem:[%s47 + $0x1] sm:$0xff]
  %v51 = vld [vmem:[%s47 + $0x9] sm:$0x7f]
  %v52 = vld [vmem:[#allocation2 + $0x2] sm:$0x1]
  %v53 = vperm.slane %v52, 0
  %v54 = vsub.f32 %v48, %v53
  %v55 = vsub.f32 %v49, %v53
  %v56 = vsub.f32 %v50, %v48
  %v57 = vsub.f32 %v51, %v49
  %s58 = scalar_lea.vmem %s0, 48
  %v59 = vld [vmem:[%s58] sm:$0xff]
  %v60 = vld [vmem:[%s58 + $0x8] sm:$0x7f]
  %v61 = vld [vmem:[%s58 + $0x1] sm:$0xff]
  %v62 = vld [vmem:[%s58 + $0x9] sm:$0x7f]
  %v63 = vld [vmem:[#allocation2 + $0x3] sm:$0x1]
  %v64 = vperm.slane %v63, 0
  %v65 = vsub.f32 %v59, %v64
  %v66 = vsub.f32 %v60, %v64
  %v67 = vsub.f32 %v61, %v59
  %v68 = vsub.f32 %v62, %v60
  %v69 = vmul.f32 %v32, %v45
  %v70 = vmul.f32 %v33, %v46
  %v71 = vmul.f32 %v43, %v34
  %v72 = vmul.f32 %v44, %v35
  %v73 = vsub.f32 %v69, %v71
  %v74 = vsub.f32 %v70, %v72
  %vm75 = vcmask 15360
  %v76 = vsel %vm75, %v73, 0.0
  %vm77 = vcmask 14336
  %v78 = vsel %vm77, %v74, 0.0
  %v79 = vadd.f32 %v76, %v78
  %v80 = vrot.slane %v79, 4
  %v81 = vadd.f32 %v79, %v80
  %v82 = vrot.slane %v81, 2
  %v83 = vadd.f32 %v81, %v82
  %v84 = vrot.slane %v83, 1
  %v85 = vadd.f32 %v83, %v84
  %v86 = vmul.f32 %v32, %v56
  %v87 = vmul.f32 %v33, %v57
  %v88 = vmul.f32 %v54, %v34
  %v89 = vmul.f32 %v55, %v35
  %v90 = vsub.f32 %v86, %v88
  %v91 = vsub.f32 %v87, %v89
  %v92 = vsel %vm75, %v90, 0.0
  %v93 = vsel %vm77, %v91, 0.0
  %v94 = vadd.f32 %v92, %v93
  %v95 = vrot.slane %v94, 4
  %v96 = vadd.f32 %v94, %v95
  %v97 = vrot.slane %v96, 2
  %v98 = vadd.f32 %v96, %v97
  %v99 = vrot.slane %v98, 1
  %v100 = vadd.f32 %v98, %v99
  %v101 = vmul.f32 %v32, %v67
  %v102 = vmul.f32 %v33, %v68
  %v103 = vmul.f32 %v65, %v34
  %v104 = vmul.f32 %v66, %v35
  %v105 = vsub.f32 %v101, %v103
  %v106 = vsub.f32 %v102, %v104
  %v107 = vsel %vm75, %v105, 0.0
  %v108 = vsel %vm77, %v106, 0.0
  %v109 = vadd.f32 %v107, %v108
  %v110 = vrot.slane %v109, 4
  %v111 = vadd.f32 %v109, %v110
  %v112 = vrot.slane %v111, 2
  %v113 = vadd.f32 %v111, %v112
  %v114 = vrot.slane %v113, 1
  %v115 = vadd.f32 %v113, %v114
  %v116 = vmul.f32 %v43, %v56
  %v117 = vmul.f32 %v44, %v57
  %v118 = vmul.f32 %v54, %v45
  %v119 = vmul.f32 %v55, %v46
  %v120 = vsub.f32 %v116, %v118
  %v121 = vsub.f32 %v117, %v119
  %v122 = vsel %vm75, %v120, 0.0
  %v123 = vsel %vm77, %v121, 0.0
  %v124 = vadd.f32 %v122, %v123
  %v125 = vrot.slane %v124, 4
  %v126 = vadd.f32 %v124, %v125
  %v127 = vrot.slane %v126, 2
  %v128 = vadd.f32 %v126, %v127
  %v129 = vrot.slane %v128, 1
  %v130 = vadd.f32 %v128, %v129
  %v131 = vmul.f32 %v43, %v67
  %v132 = vmul.f32 %v44, %v68
  %v133 = vmul.f32 %v65, %v45
  %v134 = vmul.f32 %v66, %v46
  %v135 = vsub.f32 %v131, %v133
  %v136 = vsub.f32 %v132, %v134
  %v137 = vsel %vm75, %v135, 0.0
  %v138 = vsel %vm77, %v136, 0.0
  %v139 = vadd.f32 %v137, %v138
  %v140 = vrot.slane %v139, 4
  %v141 = vadd.f32 %v139, %v140
  %v142 = vrot.slane %v141, 2
  %v143 = vadd.f32 %v141, %v142
  %v144 = vrot.slane %v143, 1
  %v145 = vadd.f32 %v143, %v144
  %v146 = vmul.f32 %v54, %v67
  %v147 = vmul.f32 %v55, %v68
  %v148 = vmul.f32 %v65, %v56
  %v149 = vmul.f32 %v66, %v57
  %v150 = vsub.f32 %v146, %v148
  %v151 = vsub.f32 %v147, %v149
  %v152 = vsel %vm75, %v150, 0.0
  %v153 = vsel %vm77, %v151, 0.0
  %v154 = vadd.f32 %v152, %v153
  %v155 = vrot.slane %v154, 4
  %v156 = vadd.f32 %v154, %v155
  %v157 = vrot.slane %v156, 2
  %v158 = vadd.f32 %v156, %v157
  %v159 = vrot.slane %v158, 1
  %v160 = vadd.f32 %v158, %v159
  %v161 = vld [vmem:[#allocation4] sm:$0x3f]
  %vm162 = vcmask 1040384
  %v163 = vsel %vm162, %v85, %v100
  %vm164 = vcmask 1041408
  %v165 = vsel %vm164, %v163, %v115
  %vm166 = vcmask 1042432
  %v167 = vsel %vm166, %v165, %v130
  %vm168 = vcmask 1043456
  %v169 = vsel %vm168, %v167, %v145
  %vm170 = vcmask 1044480
  %v171 = vsel %vm170, %v169, %v160
  %v172 = vadd.f32 %v161, %v171
  %vm173 = vcmask 13312
  %174 = vst.msk [vmem:[#allocation4] sm:$0x3f] %vm173, %v172
  // Predicated region
  $region10: #{tpu_custom_call.1} parent=0 // pred_check
    %p175 = pneg %p8
  $region11: #{tpu_custom_call.1} parent=0 // pred_check_branch
    %177 = sbr.rel (%p175) target = $region13
  $region12: #{tpu_custom_call.1} parent=0 // pred_region
    %v178 = vld [vmem:[%s0 + $0xf] sm:$0x1]
    %v179 = vld [vmem:[#allocation2] sm:$0x1]
    %v180 = vsub.f32 %v178, %v179
    %v181 = vld [vmem:[%s36 + $0xf] sm:$0x1]
    %v182 = vld [vmem:[#allocation2 + $0x1] sm:$0x1]
    %v183 = vsub.f32 %v181, %v182
    %v184 = vld [vmem:[%s47 + $0xf] sm:$0x1]
    %v185 = vld [vmem:[#allocation2 + $0x2] sm:$0x1]
    %v186 = vsub.f32 %v184, %v185
    %v187 = vld [vmem:[%s58 + $0xf] sm:$0x1]
    %v188 = vld [vmem:[#allocation2 + $0x3] sm:$0x1]
    %v189 = vsub.f32 %v187, %v188
    %v190 = vld [vmem:[#allocation4] sm:$0x3f]
    %v191 = vmul.f32 %v190, 0.5
    %v193 = vrot.slane %v183, 7
    %v196 = vrot.slane %v186, 6
    %v199 = vrot.slane %v189, 5
    %v202 = vrot.slane %v191, 4
    %v204 = vsel %vm162, %v180, %v193
    %v205 = vsel %vm164, %v204, %v196
    %v206 = vsel %vm166, %v205, %v199
    %v207 = vsel %vm168, %v206, %v202
    %208 = vst.msk [vmem:[%s1] sm:$0xff] %vm75, %v207
    %vm209 = vcmask 9216
    %210 = vst.msk [vmem:[%s1 + $0x8] sm:$0x3] %vm209, %v202
  $region13: #{tpu_custom_call.1} parent=0 // pred_fallthru
    _
  // Predicated region
  $region14: #{tpu_custom_call.1} parent=0 // pred_check
    _
  $region15: #{tpu_custom_call.1} parent=0 // pred_check_branch
    %212 = sbr.rel (0) target = $region17
  $region16: #{tpu_custom_call.1} parent=0 // pred_region
    _
  $region17: #{tpu_custom_call.1} parent=0 // pred_fallthru
    _
  // Predicated region
  $region18: #{tpu_custom_call.1} parent=0 // pred_check
    _
  $region19: #{tpu_custom_call.1} parent=0 // pred_check_branch
    %214 = sbr.rel (0) target = $region21
  $region20: #{tpu_custom_call.1} parent=0 // pred_region
    _
  $region21: #{tpu_custom_call.1} parent=0 // pred_fallthru
    _

</llo_original>
